<compile_context>
chip_gen: v5e
topology: v5e:2x2
jax: 0.10.0
libtpu: 0.0.40
codegen_flags: <defaults>
</compile_context>

<pallas_src>
import jax
import jax.numpy as jnp
from jax.experimental import pallas as pl
from jax.experimental.pallas import tpu as pltpu


def _round_up(x, m):
    return (x + m - 1) // m * m


# ---------------------------------------------------------------------------
# Pallas kernel: fused (X @ W + b) -> tree-LSTM gating -> [h | c]
# ---------------------------------------------------------------------------
def _reduce_kernel(x_ref, w_ref, b_ref, cc_ref, out_ref):
    # x_ref:   (tm, K)     bf16  activation tile [left_h | right_h | track_h]
    # w_ref:   (K, 5*S)    bf16  fused weights, gates flattened along N (resident)
    # b_ref:   (1, 5*S)    f32   left Linear's bias
    # cc_ref:  (tm, 2*S)   f32   [left_c | right_c]
    # out_ref: (tm, 2*S)   f32   [h | c]
    s = out_ref.shape[1] // 2

    # Single MXU matmul, f32 accumulation; bias folded in right after.
    gates = jnp.dot(x_ref[...], w_ref[...],
                    preferred_element_type=jnp.float32) + b_ref[...]

    a = gates[:, 0 * s:1 * s]
    i = gates[:, 1 * s:2 * s]
    f1 = gates[:, 2 * s:3 * s]
    f2 = gates[:, 3 * s:4 * s]
    o = gates[:, 4 * s:5 * s]
    c1 = cc_ref[:, :s]
    c2 = cc_ref[:, s:]

    c = (jnp.tanh(a) * jax.nn.sigmoid(i)
         + jax.nn.sigmoid(f1) * c1
         + jax.nn.sigmoid(f2) * c2)
    h = jax.nn.sigmoid(o) * jnp.tanh(c)
    out_ref[...] = jnp.concatenate([h, c], axis=1).astype(out_ref.dtype)


def tree_lstm_reduce(x, w_fused, b_row, c1, c2, *, tm_max=256):
    """x: (B, K) float; w_fused: (K_pad, 5*S) bf16; b_row: (1, 5*S) f32;
    c1, c2: (B, S) f32.  Returns (B, 2*S) f32 = [h | c]."""
    m, k = x.shape
    k_pad, n5 = w_fused.shape
    s = n5 // 5
    assert k_pad >= k and c1.shape == (m, s) and c2.shape == (m, s)

    # M tiling: sublane-aligned; prefer >=2 tiles when possible (v7x dual TC).
    m8 = _round_up(m, 8)
    if m8 >= 16:
        tm = min(tm_max, _round_up((m8 + 1) // 2, 8))
    else:
        tm = m8
    m_pad = _round_up(m, tm)

    # Per-call prep: only pad/cast the small activation-side tensors.
    x_p = jnp.pad(x.astype(jnp.bfloat16), ((0, m_pad - m), (0, k_pad - k)))
    cc = jnp.concatenate([c1.astype(jnp.float32), c2.astype(jnp.float32)], axis=1)
    cc_p = jnp.pad(cc, ((0, m_pad - m), (0, 0)))

    grid = (m_pad // tm,)
    out = pl.pallas_call(
        _reduce_kernel,
        out_shape=jax.ShapeDtypeStruct((m_pad, 2 * s), jnp.float32),
        grid_spec=pltpu.PrefetchScalarGridSpec(
            num_scalar_prefetch=0,
            grid=grid,
            in_specs=[
                pl.BlockSpec((tm, k_pad), lambda mi: (mi, 0)),    # x tile
                pl.BlockSpec((k_pad, n5), lambda mi: (0, 0)),     # W (resident)
                pl.BlockSpec((1, n5), lambda mi: (0, 0)),         # bias row
                pl.BlockSpec((tm, 2 * s), lambda mi: (mi, 0)),    # [c1 | c2]
            ],
            out_specs=pl.BlockSpec((tm, 2 * s), lambda mi: (mi, 0)),
        ),
        compiler_params=pltpu.CompilerParams(
            dimension_semantics=("parallel",)),
    )(x_p, w_fused, b_row, cc_p)
    return out[:m]


# ---------------------------------------------------------------------------
# JAX glue mirroring the PyTorch module (bundle / unbundle / forward)
# ---------------------------------------------------------------------------
def bundle(seq):
    """List of (1, 2*D) rows -> (h, c) each (B, D)."""
    if seq is None:
        return None
    cat = jnp.concatenate(list(seq), axis=0)
    d = cat.shape[1] // 2
    return cat[:, :d], cat[:, d:]


def unbundle(state):
    """(h, c) each (B, D) -> list of B rows of shape (1, 2*D)."""
    cat = jnp.concatenate(list(state), axis=1)
    return [cat[i:i + 1] for i in range(cat.shape[0])]


def init_params(key, size, tracker_size=None):
    k1, k2, k3, k4 = jax.random.split(key, 4)
    w_left = jax.random.normal(k1, (size, 5 * size), jnp.float32) / jnp.sqrt(size)
    b_left = 0.01 * jax.random.normal(k2, (5 * size,), jnp.float32)
    w_right = jax.random.normal(k3, (size, 5 * size), jnp.float32) / jnp.sqrt(size)
    parts = [w_left, w_right]
    w_track = None
    if tracker_size is not None:
        w_track = (jax.random.normal(k4, (tracker_size, 5 * size), jnp.float32)
                   / jnp.sqrt(tracker_size))
        parts.append(w_track)
    # Hoisted (once-per-model) kernel-side weight prep: fuse the 2/3 Linears along K,
    # keep gates flattened along N, pad K to a sublane multiple, cast to bf16.
    w_all = jnp.concatenate(parts, axis=0)                    # (K, 5*S)
    k_in = w_all.shape[0]
    k_pad = _round_up(k_in, 8)
    w_fused = jnp.pad(w_all, ((0, k_pad - k_in), (0, 0))).astype(jnp.bfloat16)
    b_row = b_left.reshape(1, 5 * size).astype(jnp.float32)
    return dict(size=size, tracker_size=tracker_size, k_in=k_in,
                w_left=w_left, w_right=w_right, w_track=w_track, b_left=b_left,
                w_fused=w_fused, b_row=b_row)


def reduce_batched(params, x, left_c, right_c):
    """Batched fast path (keeps (B, ...) arrays; avoids list plumbing)."""
    return tree_lstm_reduce(x, params["w_fused"], params["b_row"],
                            left_c, right_c)


def reduce_forward(params, left_in, right_in, tracking=None):
    """PyTorch-equivalent Reduce.forward: lists in, list of (1, 2*size) out."""
    left_h, left_c = bundle(left_in)
    right_h, right_c = bundle(right_in)
    xs = [left_h, right_h]
    if params["w_track"] is not None:
        track_h, _ = bundle(tracking)
        xs.append(track_h)
    x = jnp.concatenate(xs, axis=1)
    hc = reduce_batched(params, x, left_c, right_c)
    s = params["size"]
    return unbundle((hc[:, :s], hc[:, s:]))


# ---------------------------------------------------------------------------
# References for correctness checking
# ---------------------------------------------------------------------------
def _gather_inputs(params, left_in, right_in, tracking=None):
    left_h, left_c = bundle(left_in)
    right_h, right_c = bundle(right_in)
    xs = [left_h, right_h]
    if params["w_track"] is not None:
        track_h, _ = bundle(tracking)
        xs.append(track_h)
    return jnp.concatenate(xs, axis=1), left_c, right_c


def _gate_and_pack(s, lstm_in, left_c, right_c):
    a, i, f1, f2, o = [lstm_in[:, g * s:(g + 1) * s] for g in range(5)]
    c = (jnp.tanh(a) * jax.nn.sigmoid(i)
         + jax.nn.sigmoid(f1) * left_c
         + jax.nn.sigmoid(f2) * right_c)
    h = jax.nn.sigmoid(o) * jnp.tanh(c)
    return jnp.concatenate([h, c], axis=1)


def reference_forward_f32(params, left_in, right_in, tracking=None):
    """Pure-f32 mirror of the PyTorch math (no bf16 quantization)."""
    x, left_c, right_c = _gather_inputs(params, left_in, right_in, tracking)
    w_all_parts = [params["w_left"], params["w_right"]]
    if params["w_track"] is not None:
        w_all_parts.append(params["w_track"])
    w_all = jnp.concatenate(w_all_parts, axis=0)
    lstm_in = x @ w_all + params["b_left"][None, :]
    return _gate_and_pack(params["size"], lstm_in, left_c, right_c)


def reference_forward_bf16(params, left_in, right_in, tracking=None):
    """Numerically matched reference: bf16 MXU operands, f32 accumulation."""
    x, left_c, right_c = _gather_inputs(params, left_in, right_in, tracking)
    k = x.shape[1]
    lstm_in = jnp.dot(x.astype(jnp.bfloat16),
                      params["w_fused"][:k].astype(jnp.bfloat16),
                      preferred_element_type=jnp.float32) + params["b_left"][None, :]
    return _gate_and_pack(params["size"], lstm_in, left_c, right_c)


# ---------------------------------------------------------------------------
if __name__ == "__main__":
    key = jax.random.PRNGKey(0)
    B, SIZE, TRACKER = 8, 64, 32

    kp, kl, kr, kt = jax.random.split(key, 4)
    params = init_params(kp, SIZE, tracker_size=TRACKER)

    left_in = [jax.random.normal(jax.random.fold_in(kl, i), (1, 2 * SIZE), jnp.float32)
               for i in range(B)]
    right_in = [jax.random.normal(jax.random.fold_in(kr, i), (1, 2 * SIZE), jnp.float32)
                for i in range(B)]
    tracking = [jax.random.normal(jax.random.fold_in(kt, i), (1, 2 * TRACKER), jnp.float32)
                for i in range(B)]

    # --- with tracker ---
    out_list = reduce_forward(params, left_in, right_in, tracking)
    out = jax.block_until_ready(jnp.concatenate(out_list, axis=0))
    assert out.shape == (B, 2 * SIZE), out.shape

    # Tight check: reference that matches the kernel's bf16-operand / f32-acc matmul.
    ref_bf16 = jax.block_until_ready(
        reference_forward_bf16(params, left_in, right_in, tracking))
    if not jnp.allclose(out, ref_bf16, rtol=1e-3, atol=1e-3):
        raise AssertionError(f"mismatch vs bf16-matched ref: max err "
                             f"{float(jnp.max(jnp.abs(out - ref_bf16)))}")

    # Loose sanity check against the pure-f32 PyTorch math (bounds bf16 quantization).
    ref_f32 = jax.block_until_ready(
        reference_forward_f32(params, left_in, right_in, tracking))
    if not jnp.allclose(out, ref_f32, rtol=0.1, atol=0.3):
        raise AssertionError(f"mismatch vs f32 ref: max err "
                             f"{float(jnp.max(jnp.abs(out - ref_f32)))}")

    # --- without tracker (Reduce(size) with tracker_size=None) ---
    params_nt = init_params(jax.random.fold_in(kp, 1), SIZE, tracker_size=None)
    out_nt = jnp.concatenate(reduce_forward(params_nt, left_in[:2], right_in[:2]), axis=0)
    out_nt = jax.block_until_ready(out_nt)
    ref_nt = jax.block_until_ready(
        reference_forward_bf16(params_nt, left_in[:2], right_in[:2]))
    if not jnp.allclose(out_nt, ref_nt, rtol=1e-3, atol=1e-3):
        raise AssertionError(f"mismatch (no tracker): max err "
                             f"{float(jnp.max(jnp.abs(out_nt - ref_nt)))}")

    print("KERNEL_OK")
</pallas_src>

<mosaic_0001>
module attributes {stable_mosaic.version = 11 : i64} {
  func.func @_reduce_kernel(%arg0: i32, %arg1: memref<8x160xbf16, #tpu.memory_space<vmem>>, %arg2: memref<160x320xbf16, #tpu.memory_space<vmem>>, %arg3: memref<1x320xf32, #tpu.memory_space<vmem>>, %arg4: memref<8x128xf32, #tpu.memory_space<vmem>>, %arg5: memref<8x128xf32, #tpu.memory_space<vmem>>) attributes {dimension_semantics = [#tpu.dimension_semantics<parallel>], iteration_bounds = array<i64: 1>, scalar_prefetch = 0 : i64, scratch_operands = 0 : i64, tpu.core_type = #tpu.core_type<tc>, window_params = [{transform_indices = @transform_0, window_bounds = array<i64: 8, 160>}, {pipeline_mode = #tpu.pipeline_mode<synchronous>, transform_indices = @transform_1, window_bounds = array<i64: 160, 320>}, {pipeline_mode = #tpu.pipeline_mode<synchronous>, transform_indices = @transform_2, window_bounds = array<i64: 1, 320>}, {transform_indices = @transform_3, window_bounds = array<i64: 8, 128>}, {transform_indices = @transform_4, window_bounds = array<i64: 8, 128>}]} {
    %c0 = arith.constant 0 : index
    %c0_0 = arith.constant 0 : index
    %0 = vector.load %arg1[%c0, %c0_0] : memref<8x160xbf16, #tpu.memory_space<vmem>>, vector<8x160xbf16>
    %c0_1 = arith.constant 0 : index
    %c0_2 = arith.constant 0 : index
    %1 = vector.load %arg2[%c0_1, %c0_2] : memref<160x320xbf16, #tpu.memory_space<vmem>>, vector<160x320xbf16>
    %cst = arith.constant dense<0.000000e+00> : vector<8x320xf32>
    %2 = tpu.matmul %0, %1, %cst {dimension_numbers = #tpu.dot_dimension_numbers<[1], [0], [0], [1], [0, 0, 1, 1], [], []>} : vector<8x160xbf16>, vector<160x320xbf16>, vector<8x320xf32> -> vector<8x320xf32>
    %c0_3 = arith.constant 0 : index
    %c0_4 = arith.constant 0 : index
    %3 = vector.load %arg3[%c0_3, %c0_4] : memref<1x320xf32, #tpu.memory_space<vmem>>, vector<1x320xf32>
    %4 = vector.broadcast %3 : vector<1x320xf32> to vector<8x320xf32>
    %5 = arith.addf %2, %4 : vector<8x320xf32>
    %6 = vector.extract_strided_slice %5 {offsets = [0, 0], sizes = [8, 64], strides = [1, 1]} : vector<8x320xf32> to vector<8x64xf32>
    %7 = vector.extract_strided_slice %5 {offsets = [0, 64], sizes = [8, 64], strides = [1, 1]} : vector<8x320xf32> to vector<8x64xf32>
    %8 = vector.extract_strided_slice %5 {offsets = [0, 128], sizes = [8, 64], strides = [1, 1]} : vector<8x320xf32> to vector<8x64xf32>
    %9 = vector.extract_strided_slice %5 {offsets = [0, 192], sizes = [8, 64], strides = [1, 1]} : vector<8x320xf32> to vector<8x64xf32>
    %10 = vector.extract_strided_slice %5 {offsets = [0, 256], sizes = [8, 64], strides = [1, 1]} : vector<8x320xf32> to vector<8x64xf32>
    %c0_5 = arith.constant 0 : index
    %c0_6 = arith.constant 0 : index
    %11 = vector.load %arg4[%c0_5, %c0_6] : memref<8x128xf32, #tpu.memory_space<vmem>>, vector<8x64xf32>
    %c0_7 = arith.constant 0 : index
    %c64 = arith.constant 64 : index
    %12 = vector.load %arg4[%c0_7, %c64] : memref<8x128xf32, #tpu.memory_space<vmem>>, vector<8x64xf32>
    %13 = math.tanh %6 : vector<8x64xf32>
    %14 = arith.negf %7 : vector<8x64xf32>
    %15 = math.exp %14 : vector<8x64xf32>
    %cst_8 = arith.constant 1.000000e+00 : f32
    %16 = vector.broadcast %cst_8 : f32 to vector<8x64xf32>
    %17 = arith.addf %16, %15 : vector<8x64xf32>
    %18 = arith.divf %16, %17 : vector<8x64xf32>
    %19 = arith.mulf %13, %18 : vector<8x64xf32>
    %20 = arith.negf %8 : vector<8x64xf32>
    %21 = math.exp %20 : vector<8x64xf32>
    %cst_9 = arith.constant 1.000000e+00 : f32
    %22 = vector.broadcast %cst_9 : f32 to vector<8x64xf32>
    %23 = arith.addf %22, %21 : vector<8x64xf32>
    %24 = arith.divf %22, %23 : vector<8x64xf32>
    %25 = arith.mulf %24, %11 : vector<8x64xf32>
    %26 = arith.addf %19, %25 : vector<8x64xf32>
    %27 = arith.negf %9 : vector<8x64xf32>
    %28 = math.exp %27 : vector<8x64xf32>
    %cst_10 = arith.constant 1.000000e+00 : f32
    %29 = vector.broadcast %cst_10 : f32 to vector<8x64xf32>
    %30 = arith.addf %29, %28 : vector<8x64xf32>
    %31 = arith.divf %29, %30 : vector<8x64xf32>
    %32 = arith.mulf %31, %12 : vector<8x64xf32>
    %33 = arith.addf %26, %32 : vector<8x64xf32>
    %34 = arith.negf %10 : vector<8x64xf32>
    %35 = math.exp %34 : vector<8x64xf32>
    %cst_11 = arith.constant 1.000000e+00 : f32
    %36 = vector.broadcast %cst_11 : f32 to vector<8x64xf32>
    %37 = arith.addf %36, %35 : vector<8x64xf32>
    %38 = arith.divf %36, %37 : vector<8x64xf32>
    %39 = math.tanh %33 : vector<8x64xf32>
    %40 = arith.mulf %38, %39 : vector<8x64xf32>
    %41 = tpu.concatenate %40, %33 in 1 : vector<8x64xf32>, vector<8x64xf32> -> vector<8x128xf32>
    %c0_12 = arith.constant 0 : index
    %c0_13 = arith.constant 0 : index
    %42 = vector.load %arg5[%c0_12, %c0_13] : memref<8x128xf32, #tpu.memory_space<vmem>>, vector<8x128xf32>
    tpu.vector_store %arg5[%c0_12, %c0_13], %41 {strides = array<i32>} : memref<8x128xf32, #tpu.memory_space<vmem>>, vector<8x128xf32>,
    return
  }
  func.func @transform_0(%arg0: i32) -> (i32, i32) {
    %c0_i32 = arith.constant 0 : i32
    %c0_i32_0 = arith.constant 0 : i32
    return %arg0, %c0_i32 : i32, i32
  }
  func.func @transform_1(%arg0: i32) -> (i32, i32) {
    %c0_i32 = arith.constant 0 : i32
    %c0_i32_0 = arith.constant 0 : i32
    %c0_i32_1 = arith.constant 0 : i32
    return %c0_i32, %c0_i32_0 : i32, i32
  }
  func.func @transform_2(%arg0: i32) -> (i32, i32) {
    %c0_i32 = arith.constant 0 : i32
    %c0_i32_0 = arith.constant 0 : i32
    %c0_i32_1 = arith.constant 0 : i32
    return %c0_i32, %c0_i32_0 : i32, i32
  }
  func.func @transform_3(%arg0: i32) -> (i32, i32) {
    %c0_i32 = arith.constant 0 : i32
    %c0_i32_0 = arith.constant 0 : i32
    return %arg0, %c0_i32 : i32, i32
  }
  func.func @transform_4(%arg0: i32) -> (i32, i32) {
    %c0_i32 = arith.constant 0 : i32
    %c0_i32_0 = arith.constant 0 : i32
    return %arg0, %c0_i32 : i32, i32
  }
}

</mosaic_0001>

<llo_original>
// kernel: tpu_custom_call.1
$region0: #{tpu_custom_call.1}
  #allocation0 [shape = 'u32[]', space=smem, size = 0x4, offset = 0x4, fixed_abs, tag = 'smem constant byte address 0x4 - core index']
  #allocation1 [shape = 'u32[72,128]{1,0:T(1,128)}', space=vmem, size = 0x9000, scoped, tag = 'internal scratch']
  %s0 = inlined_call_operand.hbm [shape: bf16[8,160], index: 0, kind: input, shape index: {}]
  %s1 = inlined_call_operand.hbm [shape: bf16[160,320], index: 1, kind: input, shape index: {}]
  %s2 = inlined_call_operand.hbm [shape: f32[1,320], index: 2, kind: input, shape index: {}]
  %s3 = inlined_call_operand.hbm [shape: f32[8,128], index: 3, kind: input, shape index: {}]
  %s4 = inlined_call_operand.hbm [shape: f32[8,128], index: 4, kind: output, shape index: {}]
  %s5 = sld [smem:[#allocation0]]
  $region42: #{tpu_custom_call.1} parent=0
    _
  %s7 = ssub.s32 1, %s5
  %s8 = scalar_select 0, %s7, %s5
  $region1: #{tpu_custom_call.1} parent=0
    #allocation2 [shape = 'u8[4096]{0}', space=vmem, size = 0x1000, scoped, tag = 'input window, operand 0, single buffered']
    #allocation3 [shape = 's32[1]{0}', space=sflag, size = 0x4, scoped, tag = 'scoped memory for tpu_custom_call.1']
    #allocation4 [shape = 's32[1]{0}', space=sflag, size = 0x4, scoped, tag = 'scoped memory for tpu_custom_call.1']
    #allocation5 [shape = 'u8[122880]{0}', space=vmem, size = 0x1e000, scoped, tag = 'input window, operand 1, single buffered']
    #allocation6 [shape = 's32[1]{0}', space=sflag, size = 0x4, scoped, tag = 'scoped memory for tpu_custom_call.1']
    #allocation7 [shape = 'u8[1536]{0}', space=vmem, size = 0x800, scoped, tag = 'input window, operand 2, single buffered']
    #allocation8 [shape = 'u8[4096]{0}', space=vmem, size = 0x1000, scoped, tag = 'input window, operand 3, single buffered']
    #allocation9 [shape = 's32[1]{0}', space=sflag, size = 0x4, scoped, tag = 'scoped memory for tpu_custom_call.1']
    #allocation10 [shape = 'u8[4096]{0}', space=vmem, size = 0x1000, scoped, tag = 'output window, operand 0, single buffered']
    %9 = vsyncpa [#allocation3], 0
    %10 = vsyncpa [#allocation6], 0
    %11 = vsyncpa [#allocation9], 0
    %12 = vsyncpa [#allocation4], 0
    // Predicated region
    $region2: #{tpu_custom_call.1} parent=1 // pred_check
      _
    $region3: #{tpu_custom_call.1} parent=1 // pred_check_branch
      %14 = sbr.rel (0) target = $region5
    $region4: #{tpu_custom_call.1} parent=1 // pred_region
      %16 = vsyncadd [#allocation3], 0
      %s18 = sshll.u32 %s0, 4
      %s19 = int_to_ptr.hbm [resolvable:$true] %s18
      %s20 = sshll.u32 [#allocation2], 4
      %s21 = int_to_ptr.vmem [resolvable:$true] %s20
      %23 = dma.hbm_to_vmem [thread:$0]  %s19, 128, %s21, [#allocation3]
    $region5: #{tpu_custom_call.1} parent=1 // pred_fallthru
      _
    // Predicated region
    $region6: #{tpu_custom_call.1} parent=1 // pred_check
      _
    $region7: #{tpu_custom_call.1} parent=1 // pred_check_branch
      %25 = sbr.rel (0) target = $region9
    $region8: #{tpu_custom_call.1} parent=1 // pred_region
      %27 = vsyncadd [#allocation6], 0
      %s28 = sshll.u32 %s1, 4
      %s29 = int_to_ptr.hbm [resolvable:$true] %s28
      %s30 = sshll.u32 [#allocation5], 4
      %s31 = int_to_ptr.vmem [resolvable:$true] %s30
      %36 = dma.hbm_to_vmem [thread:$0]  %s29, 3840, %s31, [#allocation6], 192, 192, 12
    $region9: #{tpu_custom_call.1} parent=1 // pred_fallthru
      _
    // Predicated region
    $region10: #{tpu_custom_call.1} parent=1 // pred_check
      _
    $region11: #{tpu_custom_call.1} parent=1 // pred_check_branch
      %38 = sbr.rel (0) target = $region13
    $region12: #{tpu_custom_call.1} parent=1 // pred_region
      %40 = vsyncadd [#allocation6], 0
      %s42 = sshll.u32 %s2, 4
      %s43 = int_to_ptr.hbm [resolvable:$true] %s42
      %s44 = sshll.u32 [#allocation7], 4
      %s45 = int_to_ptr.vmem [resolvable:$true] %s44
      %47 = dma.hbm_to_vmem [thread:$0]  %s43, 48, %s45, [#allocation6]
    $region13: #{tpu_custom_call.1} parent=1 // pred_fallthru
      _
    // Predicated region
    $region14: #{tpu_custom_call.1} parent=1 // pred_check
      _
    $region15: #{tpu_custom_call.1} parent=1 // pred_check_branch
      %49 = sbr.rel (0) target = $region17
    $region16: #{tpu_custom_call.1} parent=1 // pred_region
      %51 = vsyncadd [#allocation9], 0
      %s53 = sshll.u32 %s3, 4
      %s54 = int_to_ptr.hbm [resolvable:$true] %s53
      %s55 = sshll.u32 [#allocation8], 4
      %s56 = int_to_ptr.vmem [resolvable:$true] %s55
      %58 = dma.hbm_to_vmem [thread:$0]  %s54, 128, %s56, [#allocation9]
    $region17: #{tpu_custom_call.1} parent=1 // pred_fallthru
      _
    // Predicated region
    $region18: #{tpu_custom_call.1} parent=1 // pred_check
      _
    $region19: #{tpu_custom_call.1} parent=1 // pred_check_branch
      %60 = sbr.rel (0) target = $region21
    $region20: #{tpu_custom_call.1} parent=1 // pred_region
      %62 = dma.done [#allocation3], 128
    $region21: #{tpu_custom_call.1} parent=1 // pred_fallthru
      _
    // Predicated region
    $region22: #{tpu_custom_call.1} parent=1 // pred_check
      _
    $region23: #{tpu_custom_call.1} parent=1 // pred_check_branch
      %64 = sbr.rel (0) target = $region25
    $region24: #{tpu_custom_call.1} parent=1 // pred_region
      %66 = dma.done [#allocation6], 3840
    $region25: #{tpu_custom_call.1} parent=1 // pred_fallthru
      _
    // Predicated region
    $region26: #{tpu_custom_call.1} parent=1 // pred_check
      _
    $region27: #{tpu_custom_call.1} parent=1 // pred_check_branch
      %68 = sbr.rel (0) target = $region29
    $region28: #{tpu_custom_call.1} parent=1 // pred_region
      %70 = dma.done [#allocation6], 48
    $region29: #{tpu_custom_call.1} parent=1 // pred_fallthru
      _
    // Predicated region
    $region30: #{tpu_custom_call.1} parent=1 // pred_check
      _
    $region31: #{tpu_custom_call.1} parent=1 // pred_check_branch
      %72 = sbr.rel (0) target = $region33
    $region32: #{tpu_custom_call.1} parent=1 // pred_region
      %74 = dma.done [#allocation9], 128
    $region33: #{tpu_custom_call.1} parent=1 // pred_fallthru
      _
    %v76 = vld [vmem:[#allocation2] sm:$0xff]
    %v77 = vld [vmem:[#allocation5] sm:$0xff]
    %v78 = vld [vmem:[#allocation5 + $0x8] sm:$0xf]
    %v79 = vld [vmem:[#allocation5 + $0xc] sm:$0xff]
    %v80 = vld [vmem:[#allocation5 + $0x14] sm:$0xf]
    %v81 = vld [vmem:[#allocation5 + $0x18] sm:$0xff]
    %v82 = vld [vmem:[#allocation5 + $0x20] sm:$0xf]
    %v83 = vld [vmem:[#allocation5 + $0x24] sm:$0xff]
    %v84 = vld [vmem:[#allocation5 + $0x2c] sm:$0xf]
    %v85 = vld [vmem:[#allocation5 + $0x30] sm:$0xff]
    %v86 = vld [vmem:[#allocation5 + $0x38] sm:$0xf]
    %v87 = vld [vmem:[#allocation5 + $0x3c] sm:$0xff]
    %v88 = vld [vmem:[#allocation5 + $0x44] sm:$0xf]
    %v89 = vld [vmem:[#allocation5 + $0x48] sm:$0xff]
    %v90 = vld [vmem:[#allocation5 + $0x50] sm:$0xf]
    %v91 = vld [vmem:[#allocation5 + $0x54] sm:$0xff]
    %v92 = vld [vmem:[#allocation5 + $0x5c] sm:$0xf]
    %v93 = vld [vmem:[#allocation5 + $0x60] sm:$0xff]
    %v94 = vld [vmem:[#allocation5 + $0x68] sm:$0xf]
    %v95 = vld [vmem:[#allocation5 + $0x6c] sm:$0xff]
    %v96 = vld [vmem:[#allocation5 + $0x74] sm:$0xf]
    %v97 = vld [vmem:[#allocation5 + $0x78] sm:$0xff]
    %v98 = vld [vmem:[#allocation5 + $0x80] sm:$0xf]
    %v99 = vld [vmem:[#allocation5 + $0x84] sm:$0xff]
    %v100 = vld [vmem:[#allocation5 + $0x8c] sm:$0xf]
    %v101 = vld [vmem:[#allocation5 + $0x90] sm:$0xff]
    %v102 = vld [vmem:[#allocation5 + $0x98] sm:$0xf]
    %v103 = vld [vmem:[#allocation5 + $0x9c] sm:$0xff]
    %v104 = vld [vmem:[#allocation5 + $0xa4] sm:$0xf]
    %v105 = vld [vmem:[#allocation5 + $0xa8] sm:$0xff]
    %v106 = vld [vmem:[#allocation5 + $0xb0] sm:$0xf]
    %v107 = vld [vmem:[#allocation5 + $0xb4] sm:$0xff]
    %v108 = vld [vmem:[#allocation5 + $0xbc] sm:$0xf]
    %v109 = vld [vmem:[#allocation5 + $0xc0] sm:$0xff]
    %v110 = vld [vmem:[#allocation5 + $0xc8] sm:$0xf]
    %v111 = vld [vmem:[#allocation5 + $0xcc] sm:$0xff]
    %v112 = vld [vmem:[#allocation5 + $0xd4] sm:$0xf]
    %v113 = vld [vmem:[#allocation5 + $0xd8] sm:$0xff]
    %v114 = vld [vmem:[#allocation5 + $0xe0] sm:$0xf]
    %v115 = vld [vmem:[#allocation5 + $0xe4] sm:$0xff]
    %v116 = vld [vmem:[#allocation5 + $0xec] sm:$0xf]
    %v117 = vld [vmem:[#allocation7] sm:$0x7]
    %v119 = vperm.slane %v117, 0
    %v120 = vperm.slane %v117, 1
    %v121 = vperm.slane %v117, 2
    %v126 = vunpack.c.l.b16 %v76
    %v127 = vunpack.c.h.b16 %v76
    %v128 = vpack.c.b16 %v126, %v126
    %v129 = vpack.c.b16 %v127, %v127
    %v171 = vunpack.c.l.b16 %v77
    %v172 = vunpack.c.h.b16 %v77
    %v173 = vunpack.c.l.b16 %v78
    %v174 = vunpack.c.l.b16 %v79
    %v175 = vunpack.c.h.b16 %v79
    %v176 = vunpack.c.l.b16 %v80
    %v177 = vunpack.c.l.b16 %v81
    %v178 = vunpack.c.h.b16 %v81
    %v179 = vunpack.c.l.b16 %v82
    %v180 = vunpack.c.l.b16 %v83
    %v181 = vunpack.c.h.b16 %v83
    %v182 = vunpack.c.l.b16 %v84
    %v183 = vunpack.c.l.b16 %v85
    %v184 = vunpack.c.h.b16 %v85
    %v185 = vunpack.c.l.b16 %v86
    %v186 = vunpack.c.l.b16 %v87
    %v187 = vunpack.c.h.b16 %v87
    %v188 = vunpack.c.l.b16 %v88
    %v189 = vunpack.c.l.b16 %v89
    %v190 = vunpack.c.h.b16 %v89
    %v191 = vunpack.c.l.b16 %v90
    %v192 = vunpack.c.l.b16 %v91
    %v193 = vunpack.c.h.b16 %v91
    %v194 = vunpack.c.l.b16 %v92
    %v195 = vunpack.c.l.b16 %v93
    %v196 = vunpack.c.h.b16 %v93
    %v197 = vunpack.c.l.b16 %v94
    %v198 = vunpack.c.l.b16 %v95
    %v199 = vunpack.c.h.b16 %v95
    %v200 = vunpack.c.l.b16 %v96
    %v201 = vunpack.c.l.b16 %v97
    %v202 = vunpack.c.h.b16 %v97
    %v203 = vunpack.c.l.b16 %v98
    %v204 = vunpack.c.l.b16 %v99
    %v205 = vunpack.c.h.b16 %v99
    %v206 = vunpack.c.l.b16 %v100
    %v207 = vunpack.c.l.b16 %v101
    %v208 = vunpack.c.h.b16 %v101
    %v209 = vunpack.c.l.b16 %v102
    %v210 = vunpack.c.l.b16 %v103
    %v211 = vunpack.c.h.b16 %v103
    %v212 = vunpack.c.l.b16 %v104
    %v213 = vunpack.c.l.b16 %v105
    %v214 = vunpack.c.h.b16 %v105
    %v215 = vunpack.c.l.b16 %v106
    %v216 = vunpack.c.l.b16 %v107
    %v217 = vunpack.c.h.b16 %v107
    %v218 = vunpack.c.l.b16 %v108
    %v219 = vunpack.c.l.b16 %v109
    %v220 = vunpack.c.h.b16 %v109
    %v221 = vunpack.c.l.b16 %v110
    %v222 = vunpack.c.l.b16 %v111
    %v223 = vunpack.c.h.b16 %v111
    %v224 = vunpack.c.l.b16 %v112
    %v225 = vunpack.c.l.b16 %v113
    %v226 = vunpack.c.h.b16 %v113
    %v227 = vunpack.c.l.b16 %v114
    %v228 = vunpack.c.l.b16 %v115
    %v229 = vunpack.c.h.b16 %v115
    %v230 = vunpack.c.l.b16 %v116
    %v231 = vpack.c.b16 %v174, %v171
    %v232 = vpack.c.b16 %v175, %v172
    %v233 = vpack.c.b16 %v176, %v173
    %v234 = vpack.c.b16 %v180, %v177
    %v235 = vpack.c.b16 %v181, %v178
    %v236 = vpack.c.b16 %v182, %v179
    %v237 = vpack.c.b16 %v186, %v183
    %v238 = vpack.c.b16 %v187, %v184
    %v239 = vpack.c.b16 %v188, %v185
    %v240 = vpack.c.b16 %v192, %v189
    %v241 = vpack.c.b16 %v193, %v190
    %v242 = vpack.c.b16 %v194, %v191
    %v243 = vpack.c.b16 %v198, %v195
    %v244 = vpack.c.b16 %v199, %v196
    %v245 = vpack.c.b16 %v200, %v197
    %v246 = vpack.c.b16 %v204, %v201
    %v247 = vpack.c.b16 %v205, %v202
    %v248 = vpack.c.b16 %v206, %v203
    %v249 = vpack.c.b16 %v210, %v207
    %v250 = vpack.c.b16 %v211, %v208
    %v251 = vpack.c.b16 %v212, %v209
    %v252 = vpack.c.b16 %v216, %v213
    %v253 = vpack.c.b16 %v217, %v214
    %v254 = vpack.c.b16 %v218, %v215
    %v255 = vpack.c.b16 %v222, %v219
    %v256 = vpack.c.b16 %v223, %v220
    %v257 = vpack.c.b16 %v224, %v221
    %v258 = vpack.c.b16 %v228, %v225
    %v259 = vpack.c.b16 %v229, %v226
    %v260 = vpack.c.b16 %v230, %v227
    %vm291 = vcmask 261120
    %v293 = vsel %vm291, %v129, 0
    %295 = vmatpush.bf16.msra.mxu0 %v252
    %296 = vmatpush.bf16.msra.mxu0 %v249
    %297 = vmatpush.bf16.msra.mxu0 %v246
    %298 = vmatpush.bf16.msra.mxu0 %v243
    %299 = vmatpush.bf16.msra.mxu0 %v240
    %300 = vmatpush.bf16.msra.mxu0 %v237
    %301 = vmatpush.bf16.msra.mxu0 %v234
    %302 = vmatpush.bf16.msra.mxu0 %v231
    %303 = vmatmul.bf16.gmra.mxu0 %v128
    %v304 = vpop.f32.mrf.mxu0
    %v305 = vadd.f32 %v119, %v304
    %v306 = vpop.f32.mrf.mxu0
    %307 = vdwg.mxu0
    %308 = vmatpush.bf16.msra.mxu0 0
    %309 = vmatpush.bf16.msra.mxu0 0
    %310 = vmatpush.bf16.msra.mxu0 0
    %311 = vmatpush.bf16.msra.mxu0 0
    %312 = vmatpush.bf16.msra.mxu0 0
    %313 = vmatpush.bf16.msra.mxu0 0
    %314 = vmatpush.bf16.msra.mxu0 %v258
    %315 = vmatpush.bf16.msra.mxu0 %v255
    %316 = vmatmul.bf16.gmra.mxu0 %v293
    %v317 = vpop.f32.mrf.mxu0
    %v318 = vadd.f32 %v305, %v317
    %v319 = vpop.f32.mrf.mxu0
    %320 = vdwg.mxu0
    %321 = vmatpush.bf16.msra.mxu0 %v253
    %322 = vmatpush.bf16.msra.mxu0 %v250
    %323 = vmatpush.bf16.msra.mxu0 %v247
    %324 = vmatpush.bf16.msra.mxu0 %v244
    %325 = vmatpush.bf16.msra.mxu0 %v241
    %326 = vmatpush.bf16.msra.mxu0 %v238
    %327 = vmatpush.bf16.msra.mxu0 %v235
    %328 = vmatpush.bf16.msra.mxu0 %v232
    %329 = vmatmul.bf16.gmra.mxu0 %v128
    %v330 = vpop.f32.mrf.mxu0
    %v331 = vadd.f32 %v120, %v330
    %v332 = vpop.f32.mrf.mxu0
    %333 = vdwg.mxu0
    %334 = vmatpush.bf16.msra.mxu0 0
    %335 = vmatpush.bf16.msra.mxu0 0
    %336 = vmatpush.bf16.msra.mxu0 0
    %337 = vmatpush.bf16.msra.mxu0 0
    %338 = vmatpush.bf16.msra.mxu0 0
    %339 = vmatpush.bf16.msra.mxu0 0
    %340 = vmatpush.bf16.msra.mxu0 %v259
    %341 = vmatpush.bf16.msra.mxu0 %v256
    %342 = vmatmul.bf16.gmra.mxu0 %v293
    %v343 = vpop.f32.mrf.mxu0
    %v344 = vadd.f32 %v331, %v343
    %v345 = vpop.f32.mrf.mxu0
    %346 = vdwg.mxu0
    %347 = vmatpush.bf16.msra.mxu0 %v254
    %348 = vmatpush.bf16.msra.mxu0 %v251
    %349 = vmatpush.bf16.msra.mxu0 %v248
    %350 = vmatpush.bf16.msra.mxu0 %v245
    %351 = vmatpush.bf16.msra.mxu0 %v242
    %352 = vmatpush.bf16.msra.mxu0 %v239
    %353 = vmatpush.bf16.msra.mxu0 %v236
    %354 = vmatpush.bf16.msra.mxu0 %v233
    %355 = vmatmul.bf16.gmra.mxu0 %v128
    %v356 = vpop.f32.mrf.mxu0
    %v357 = vadd.f32 %v121, %v356
    %v358 = vpop.f32.mrf.mxu0
    %359 = vdwg.mxu0
    %360 = vmatpush.bf16.msra.mxu0 0
    %361 = vmatpush.bf16.msra.mxu0 0
    %362 = vmatpush.bf16.msra.mxu0 0
    %363 = vmatpush.bf16.msra.mxu0 0
    %364 = vmatpush.bf16.msra.mxu0 0
    %365 = vmatpush.bf16.msra.mxu0 0
    %366 = vmatpush.bf16.msra.mxu0 %v260
    %367 = vmatpush.bf16.msra.mxu0 %v257
    %368 = vmatmul.bf16.gmra.mxu0 %v293
    %v369 = vpop.f32.mrf.mxu0
    %v370 = vadd.f32 %v357, %v369
    %v371 = vpop.f32.mrf.mxu0
    %372 = vdwg.mxu0
    %v373 = vld [vmem:[#allocation8] sm:$0xff]
    %v374 = vtanh.pop %v318
    %v375 = vxor.u32 %v318, 2147483648
    %v376 = vmul.f32 %v375, 1.442695
    %v377 = vpow.pop %v376
    %v378 = vadd.f32 %v377, 1.0
    %v379 = vrcp.pop %v378
    %v380 = vmul.f32 %v378, %v379
    %v381 = vsub.f32 1.0, %v380
    %v382 = vmul.f32 %v379, %v381
    %v383 = vadd.f32 %v379, %v382
    %vm384 = vweird.f32 %v378
    %vm385 = vweird.f32 %v379
    %vm386 = vmor %vm384, %vm385
    %v387 = vsel %vm386, %v379, %v383
    %v388 = vand.u32 2147483647, %v378
    %vm389 = vcmp.eq.f32.partialorder %v388, 8.507059e+37
    %v390 = vand.u32 %v378, 2147483648
    %v391 = vor.u32 1.1754944e-38, %v390
    %v392 = vsel %vm389, %v391, %v387
    %v393 = vmul.f32 1.0, %v392
    %395 = vrot.lane.b32.xlu0 %v393, 64
    %v396 = vpop.permute.xlu0 %395
    %v398 = vmul.f32 %v374, %v396
    %v399 = vxor.u32 %v344, 2147483648
    %v400 = vmul.f32 %v399, 1.442695
    %v401 = vpow.pop %v400
    %v402 = vadd.f32 %v401, 1.0
    %v403 = vrcp.pop %v402
    %v404 = vmul.f32 %v402, %v403
    %v405 = vsub.f32 1.0, %v404
    %v406 = vmul.f32 %v403, %v405
    %v407 = vadd.f32 %v403, %v406
    %vm408 = vweird.f32 %v402
    %vm409 = vweird.f32 %v403
    %vm410 = vmor %vm408, %vm409
    %v411 = vsel %vm410, %v403, %v407
    %v412 = vand.u32 2147483647, %v402
    %vm413 = vcmp.eq.f32.partialorder %v412, 8.507059e+37
    %v414 = vand.u32 %v402, 2147483648
    %v415 = vor.u32 1.1754944e-38, %v414
    %v416 = vsel %vm413, %v415, %v411
    %v417 = vmul.f32 1.0, %v416
    %v418 = vmul.f32 %v417, %v373
    %v419 = vadd.f32 %v398, %v418
    %421 = vrot.lane.b32.xlu0 %v418, 64
    %v422 = vpop.permute.xlu0 %421
    %v424 = vadd.f32 %v419, %v422
    %v425 = vxor.u32 %v370, 2147483648
    %v426 = vmul.f32 %v425, 1.442695
    %v427 = vpow.pop %v426
    %v428 = vadd.f32 %v427, 1.0
    %v429 = vrcp.pop %v428
    %v430 = vmul.f32 %v428, %v429
    %v431 = vsub.f32 1.0, %v430
    %v432 = vmul.f32 %v429, %v431
    %v433 = vadd.f32 %v429, %v432
    %vm434 = vweird.f32 %v428
    %vm435 = vweird.f32 %v429
    %vm436 = vmor %vm434, %vm435
    %v437 = vsel %vm436, %v429, %v433
    %v438 = vand.u32 2147483647, %v428
    %vm439 = vcmp.eq.f32.partialorder %v438, 8.507059e+37
    %v440 = vand.u32 %v428, 2147483648
    %v441 = vor.u32 1.1754944e-38, %v440
    %v442 = vsel %vm439, %v441, %v437
    %v443 = vmul.f32 1.0, %v442
    %v444 = vtanh.pop %v424
    %v445 = vmul.f32 %v443, %v444
    %447 = vrot.lane.b32.xlu0 %v424, 64
    %v448 = vpop.permute.xlu0 %447
    %vm450 = vcmask 523264
    %v451 = vsel %vm450, %v445, %v448
    %452 = vst [vmem:[#allocation10] sm:$0xff] %v451
    // Predicated region
    $region34: #{tpu_custom_call.1} parent=1 // pred_check
      _
    $region35: #{tpu_custom_call.1} parent=1 // pred_check_branch
      %454 = sbr.rel (0) target = $region37
    $region36: #{tpu_custom_call.1} parent=1 // pred_region
      %456 = vsyncadd [#allocation4], 0
      %s458 = sshll.u32 [#allocation10], 4
      %s459 = int_to_ptr.vmem [resolvable:$true] %s458
      %s460 = sshll.u32 %s4, 4
      %s461 = int_to_ptr.hbm [resolvable:$true] %s460
      %463 = dma.vmem_to_hbm [thread:$0]  %s459, 128, %s461, [#allocation4]
    $region37: #{tpu_custom_call.1} parent=1 // pred_fallthru
      _
    // Predicated region
    $region38: #{tpu_custom_call.1} parent=1 // pred_check
      _
    $region39: #{tpu_custom_call.1} parent=1 // pred_check_branch
      %465 = sbr.rel (0) target = $region41
    $region40: #{tpu_custom_call.1} parent=1 // pred_region
      %467 = dma.done [#allocation4], 128
    $region41: #{tpu_custom_call.1} parent=1 // pred_fallthru
      _
    %468 = vsyncpa [#allocation3], 1
    %469 = vsyncpa [#allocation6], 1
    %470 = vsyncpa [#allocation9], 1
    %471 = vsyncpa [#allocation4], 1

</llo_original>
